<compile_context>
chip_gen: v5e
topology: v5e:2x2
jax: 0.10.0
libtpu: 0.0.40
codegen_flags: <defaults>
</compile_context>

<pallas_src>
import jax
import jax.numpy as jnp
from jax import lax
from jax.experimental import pallas as pl
from jax.experimental.pallas import tpu as pltpu


def _round_up(x, m):
    return ((x + m - 1) // m) * m


def _mlm_head_kernel(x_ref, w_ref, b_ref, o_ref):
    # x_ref: (tm, H)  w_ref: (tn, H)  b_ref: (1, tn)  o_ref: (tm, tn)
    # Contract hidden axes directly on the MXU (no pre-transpose of the weight).
    acc = lax.dot_general(
        x_ref[...], w_ref[...],
        dimension_numbers=(((1,), (1,)), ((), ())),
        preferred_element_type=jnp.float32,
    )
    o_ref[...] = (acc + b_ref[...]).astype(o_ref.dtype)


def masked_lm_forward(x, weight, bias, *, tm=256, tn=1024):
    """
    x      : (batch, seq, hidden) float32
    weight : (vocab, hidden) float32   (PyTorch nn.Linear layout, NOT transposed)
    bias   : (vocab,) float32
    returns: (batch, seq, vocab) float32  == x @ weight.T + bias
    """
    B, S, H = x.shape
    V, Hw = weight.shape
    assert H == Hw, "weight hidden dim mismatch"
    M = B * S

    # Effective tiles: big enough to feed the MXU, but never larger than the
    # (aligned) problem so tiny test shapes don't over-pad.
    tm_eff = min(tm, _round_up(M, 8))
    tn_eff = min(tn, _round_up(V, 128))

    Mp = _round_up(M, tm_eff)
    Vp = _round_up(V, tn_eff)

    x2d = x.reshape(M, H)
    if Mp != M:
        x2d = jnp.pad(x2d, ((0, Mp - M), (0, 0)))

    w = weight
    b = bias
    if Vp != V:
        w = jnp.pad(w, ((0, Vp - V), (0, 0)))
        b = jnp.pad(b, (0, Vp - V))
    b2d = b.reshape(1, Vp)

    # Vocab axis OUTER, row axis INNER: each (tn, H) weight tile is fetched once
    # and reused across all M/tm row tiles (weight stream dominates HBM traffic).
    grid = (Vp // tn_eff, Mp // tm_eff)

    out2d = pl.pallas_call(
        _mlm_head_kernel,
        out_shape=jax.ShapeDtypeStruct((Mp, Vp), x.dtype),
        grid_spec=pltpu.PrefetchScalarGridSpec(
            num_scalar_prefetch=0,
            grid=grid,
            in_specs=[
                pl.BlockSpec((tm_eff, H), lambda j, i: (i, 0)),   # x row tile
                pl.BlockSpec((tn_eff, H), lambda j, i: (j, 0)),   # weight vocab tile
                pl.BlockSpec((1, tn_eff), lambda j, i: (0, j)),   # bias tile
            ],
            out_specs=pl.BlockSpec((tm_eff, tn_eff), lambda j, i: (i, j)),
        ),
        compiler_params=pltpu.CompilerParams(
            dimension_semantics=("parallel", "parallel"),
            # Headroom above the default scoped limit while staying well under
            # v7x's 64 MiB physical VMEM.
            vmem_limit_bytes=48 * 1024 * 1024,
        ),
    )(x2d, w, b2d)

    return out2d[:M, :V].reshape(B, S, V)


if __name__ == "__main__":
    # Small shapes consistent with the module: hidden=32, vocab_size=128,
    # batch=2, seq=8.
    batch, seq, hidden, vocab_size = 2, 8, 32, 128

    key = jax.random.PRNGKey(0)
    kx, kw, kb = jax.random.split(key, 3)

    # Deterministic init mirroring nn.Linear: U(-1/sqrt(hidden), 1/sqrt(hidden))
    bound = 1.0 / (hidden ** 0.5)
    x = jax.random.normal(kx, (batch, seq, hidden), dtype=jnp.float32)
    weight = jax.random.uniform(kw, (vocab_size, hidden), dtype=jnp.float32,
                                minval=-bound, maxval=bound)
    bias = jax.random.uniform(kb, (vocab_size,), dtype=jnp.float32,
                              minval=-bound, maxval=bound)

    y = masked_lm_forward(x, weight, bias)
    y = jax.block_until_ready(y)

    # Reference check against plain JAX (same math as the PyTorch forward).
    y_ref = jnp.einsum("bsh,vh->bsv", x, weight) + bias
    assert y.shape == (batch, seq, vocab_size)
    assert jnp.allclose(y, y_ref, atol=1e-5, rtol=1e-5)

    print("KERNEL_OK")
</pallas_src>

<mosaic_0001>
module attributes {stable_mosaic.version = 11 : i64} {
  func.func @_mlm_head_kernel(%arg0: i32, %arg1: i32, %arg2: memref<16x32xf32, #tpu.memory_space<vmem>>, %arg3: memref<128x32xf32, #tpu.memory_space<vmem>>, %arg4: memref<1x128xf32, #tpu.memory_space<vmem>>, %arg5: memref<16x128xf32, #tpu.memory_space<vmem>>) attributes {dimension_semantics = [#tpu.dimension_semantics<parallel>, #tpu.dimension_semantics<parallel>], iteration_bounds = array<i64: 1, 1>, scalar_prefetch = 0 : i64, scratch_operands = 0 : i64, tpu.core_type = #tpu.core_type<tc>, window_params = [{transform_indices = @transform_0, window_bounds = array<i64: 16, 32>}, {transform_indices = @transform_1, window_bounds = array<i64: 128, 32>}, {transform_indices = @transform_2, window_bounds = array<i64: 1, 128>}, {transform_indices = @transform_3, window_bounds = array<i64: 16, 128>}]} {
    %c0 = arith.constant 0 : index
    %c0_0 = arith.constant 0 : index
    %0 = vector.load %arg2[%c0, %c0_0] : memref<16x32xf32, #tpu.memory_space<vmem>>, vector<16x32xf32>
    %c0_1 = arith.constant 0 : index
    %c0_2 = arith.constant 0 : index
    %1 = vector.load %arg3[%c0_1, %c0_2] : memref<128x32xf32, #tpu.memory_space<vmem>>, vector<128x32xf32>
    %cst = arith.constant dense<0.000000e+00> : vector<16x128xf32>
    %2 = tpu.matmul %0, %1, %cst {dimension_numbers = #tpu.dot_dimension_numbers<[1], [1], [0], [0], [0, 0, 1, 0], [], []>} : vector<16x32xf32>, vector<128x32xf32>, vector<16x128xf32> -> vector<16x128xf32>
    %c0_3 = arith.constant 0 : index
    %c0_4 = arith.constant 0 : index
    %3 = vector.load %arg4[%c0_3, %c0_4] : memref<1x128xf32, #tpu.memory_space<vmem>>, vector<1x128xf32>
    %4 = vector.broadcast %3 : vector<1x128xf32> to vector<16x128xf32>
    %5 = arith.addf %2, %4 : vector<16x128xf32>
    %c0_5 = arith.constant 0 : index
    %c0_6 = arith.constant 0 : index
    %6 = vector.load %arg5[%c0_5, %c0_6] : memref<16x128xf32, #tpu.memory_space<vmem>>, vector<16x128xf32>
    tpu.vector_store %arg5[%c0_5, %c0_6], %5 {strides = array<i32>} : memref<16x128xf32, #tpu.memory_space<vmem>>, vector<16x128xf32>,
    return
  }
  func.func @transform_0(%arg0: i32, %arg1: i32) -> (i32, i32) {
    %c0_i32 = arith.constant 0 : i32
    %c0_i32_0 = arith.constant 0 : i32
    return %arg1, %c0_i32 : i32, i32
  }
  func.func @transform_1(%arg0: i32, %arg1: i32) -> (i32, i32) {
    %c0_i32 = arith.constant 0 : i32
    %c0_i32_0 = arith.constant 0 : i32
    return %arg0, %c0_i32 : i32, i32
  }
  func.func @transform_2(%arg0: i32, %arg1: i32) -> (i32, i32) {
    %c0_i32 = arith.constant 0 : i32
    %c0_i32_0 = arith.constant 0 : i32
    return %c0_i32, %arg0 : i32, i32
  }
  func.func @transform_3(%arg0: i32, %arg1: i32) -> (i32, i32) {
    %c0_i32 = arith.constant 0 : i32
    return %arg1, %arg0 : i32, i32
  }
}

</mosaic_0001>

<llo_original>
// kernel: tpu_custom_call.1
$region0: #{tpu_custom_call.1}
  #allocation0 [shape = 'u32[]', space=smem, size = 0x4, offset = 0x4, fixed_abs, tag = 'smem constant byte address 0x4 - core index']
  #allocation1 [shape = 'u32[72,128]{1,0:T(1,128)}', space=vmem, size = 0x9000, scoped, tag = 'internal scratch']
  %s0 = inlined_call_operand.vmem [shape: f32[16,32], index: 0, kind: input, shape index: {}]
  %s1 = inlined_call_operand.vmem [shape: f32[128,32], index: 1, kind: input, shape index: {}]
  %s2 = inlined_call_operand.vmem [shape: f32[1,128], index: 2, kind: input, shape index: {}]
  %s3 = inlined_call_operand.hbm [shape: f32[16,128], index: 3, kind: output, shape index: {}]
  %s4 = sld [smem:[#allocation0]]
  $region22: #{tpu_custom_call.1} parent=0
    _
  %s6 = ssub.s32 1, %s4
  %s7 = scalar_select 0, %s6, %s4
  $region1: #{tpu_custom_call.1} parent=0
    #allocation2 [shape = 'u8[8192]{0}', space=vmem, size = 0x2000, scoped, tag = 'output window, operand 0, single buffered']
    #allocation3 [shape = 's32[1]{0}', space=sflag, size = 0x4, scoped, tag = 'scoped memory for tpu_custom_call.1']
    %8 = vsyncpa [#allocation3], 0
    // Predicated region
    $region2: #{tpu_custom_call.1} parent=1 // pred_check
      _
    $region3: #{tpu_custom_call.1} parent=1 // pred_check_branch
      %10 = sbr.rel (0) target = $region5
    $region4: #{tpu_custom_call.1} parent=1 // pred_region
      _
    $region5: #{tpu_custom_call.1} parent=1 // pred_fallthru
      _
    // Predicated region
    $region6: #{tpu_custom_call.1} parent=1 // pred_check
      _
    $region7: #{tpu_custom_call.1} parent=1 // pred_check_branch
      %12 = sbr.rel (0) target = $region9
    $region8: #{tpu_custom_call.1} parent=1 // pred_region
      _
    $region9: #{tpu_custom_call.1} parent=1 // pred_fallthru
      _
    // Predicated region
    $region10: #{tpu_custom_call.1} parent=1 // pred_check
      _
    $region11: #{tpu_custom_call.1} parent=1 // pred_check_branch
      %14 = sbr.rel (0) target = $region13
    $region12: #{tpu_custom_call.1} parent=1 // pred_region
      _
    $region13: #{tpu_custom_call.1} parent=1 // pred_fallthru
      _
    %v15 = vld [vmem:[%s0] sm:$0xff]
    %v16 = vld [vmem:[%s0 + $0x8] sm:$0xff]
    %v17 = vld [vmem:[%s1] sm:$0xff]
    %v18 = vld [vmem:[%s1 + $0x8] sm:$0xff]
    %v19 = vld [vmem:[%s1 + $0x10] sm:$0xff]
    %v20 = vld [vmem:[%s1 + $0x18] sm:$0xff]
    %v21 = vld [vmem:[%s1 + $0x20] sm:$0xff]
    %v22 = vld [vmem:[%s1 + $0x28] sm:$0xff]
    %v23 = vld [vmem:[%s1 + $0x30] sm:$0xff]
    %v24 = vld [vmem:[%s1 + $0x38] sm:$0xff]
    %v25 = vld [vmem:[%s1 + $0x40] sm:$0xff]
    %v26 = vld [vmem:[%s1 + $0x48] sm:$0xff]
    %v27 = vld [vmem:[%s1 + $0x50] sm:$0xff]
    %v28 = vld [vmem:[%s1 + $0x58] sm:$0xff]
    %v29 = vld [vmem:[%s1 + $0x60] sm:$0xff]
    %v30 = vld [vmem:[%s1 + $0x68] sm:$0xff]
    %v31 = vld [vmem:[%s1 + $0x70] sm:$0xff]
    %v32 = vld [vmem:[%s1 + $0x78] sm:$0xff]
    %v33 = vld [vmem:[%s2] sm:$0x1]
    %v35 = vperm.slane %v33, 0
    %vm37 = vcmask 261120
    %v39 = vsel %vm37, %v15, 0
    %v42 = vsel %vm37, %v16, 0
    %v45 = vsel %vm37, %v17, 0
    %v48 = vsel %vm37, %v18, 0
    %v51 = vsel %vm37, %v19, 0
    %v54 = vsel %vm37, %v20, 0
    %v57 = vsel %vm37, %v21, 0
    %v60 = vsel %vm37, %v22, 0
    %v63 = vsel %vm37, %v23, 0
    %v66 = vsel %vm37, %v24, 0
    %v69 = vsel %vm37, %v25, 0
    %v72 = vsel %vm37, %v26, 0
    %v75 = vsel %vm37, %v27, 0
    %v78 = vsel %vm37, %v28, 0
    %v81 = vsel %vm37, %v29, 0
    %v84 = vsel %vm37, %v30, 0
    %v87 = vsel %vm37, %v31, 0
    %v90 = vsel %vm37, %v32, 0
    %92 = vmatpush.xpose.msra.mxu0 %v90
    %93 = vmatpush.xpose.msra.mxu0 %v87
    %94 = vmatpush.xpose.msra.mxu0 %v84
    %95 = vmatpush.xpose.msra.mxu0 %v81
    %96 = vmatpush.xpose.msra.mxu0 %v78
    %97 = vmatpush.xpose.msra.mxu0 %v75
    %98 = vmatpush.xpose.msra.mxu0 %v72
    %99 = vmatpush.xpose.msra.mxu0 %v69
    %100 = vmatpush.xpose.msra.mxu0 %v66
    %101 = vmatpush.xpose.msra.mxu0 %v63
    %102 = vmatpush.xpose.msra.mxu0 %v60
    %103 = vmatpush.xpose.msra.mxu0 %v57
    %104 = vmatpush.xpose.msra.mxu0 %v54
    %105 = vmatpush.xpose.msra.mxu0 %v51
    %106 = vmatpush.xpose.msra.mxu0 %v48
    %107 = vmatpush.xpose.msra.mxu0 %v45
    %108 = vmatmul.f32.gmra.mxu0 %v39
    %v109 = vpop.f32.mrf.mxu0
    %v110 = vadd.f32 %v35, %v109
    %111 = vmatmul.f32.gmra.mxu0 %v42
    %v112 = vpop.f32.mrf.mxu0
    %v113 = vadd.f32 %v35, %v112
    %114 = vdwg.mxu0
    %115 = vst [vmem:[#allocation2] sm:$0xff] %v110
    %116 = vst [vmem:[#allocation2 + $0x8] sm:$0xff] %v113
    // Predicated region
    $region14: #{tpu_custom_call.1} parent=1 // pred_check
      _
    $region15: #{tpu_custom_call.1} parent=1 // pred_check_branch
      %118 = sbr.rel (0) target = $region17
    $region16: #{tpu_custom_call.1} parent=1 // pred_region
      %120 = vsyncadd [#allocation3], 0
      %s121 = sshll.u32 [#allocation2], 4
      %s122 = int_to_ptr.vmem [resolvable:$true] %s121
      %s123 = sshll.u32 %s3, 4
      %s124 = int_to_ptr.hbm [resolvable:$true] %s123
      %129 = dma.vmem_to_hbm [thread:$0]  %s122, 256, %s124, [#allocation3], 128, 128, 8
    $region17: #{tpu_custom_call.1} parent=1 // pred_fallthru
      _
    // Predicated region
    $region18: #{tpu_custom_call.1} parent=1 // pred_check
      _
    $region19: #{tpu_custom_call.1} parent=1 // pred_check_branch
      %131 = sbr.rel (0) target = $region21
    $region20: #{tpu_custom_call.1} parent=1 // pred_region
      %133 = dma.done [#allocation3], 256
    $region21: #{tpu_custom_call.1} parent=1 // pred_fallthru
      _
    %134 = vsyncpa [#allocation3], 1

</llo_original>
